<compile_context>
chip_gen: v5e
topology: v5e:2x2
jax: 0.10.0
libtpu: 0.0.40
codegen_flags: <defaults>
</compile_context>

<pallas_src>
import functools
import math

import jax
import jax.numpy as jnp
from jax.experimental import pallas as pl
from jax.experimental.pallas import tpu as pltpu


def _round_up(x: int, m: int) -> int:
    return ((x + m - 1) // m) * m


def _round_down(x: int, m: int) -> int:
    return (x // m) * m


def _logit_prob_kernel(x_ref, theta_ref, o_ref, *, n_keep: int):
    # MXU matmul with true f32 accumulation and f32-mantissa passes.
    acc = jnp.dot(
        x_ref[...],
        theta_ref[...],
        preferred_element_type=jnp.float32,
        precision=jax.lax.Precision.HIGHEST,
    )
    # Force the base-category column to exact 0 regardless of x's values
    # (inf/NaN safe), matching F.pad semantics.  Only n_class lanes wide: cheap.
    col = jax.lax.broadcasted_iota(jnp.int32, acc.shape, 1)
    acc = jnp.where(col < n_keep, acc, jnp.zeros_like(acc))
    o_ref[...] = acc.astype(o_ref.dtype)


def _vmem_limits() -> tuple[int, int]:
    """Return (vmem_limit_bytes, internal tiling budget) gated on chip VMEM."""
    try:
        phys = pltpu.get_tpu_info().vmem_capacity_bytes
    except Exception:  # unknown chip / no info: be conservative
        phys = 64 * 1024 * 1024
    if phys >= 96 * 1024 * 1024:
        # v5e / v6e: 128 MiB physical VMEM -> raise scoped limit, bigger tiles.
        return 96 * 1024 * 1024, 80 * 1024 * 1024
    # v7x (64 MiB physical) or unknown: keep the conservative path.
    return 32 * 1024 * 1024, 24 * 1024 * 1024


def _choose_tm(n_rows: int, x_ncol: int, n_class: int, budget: int) -> int:
    """Largest row tile that fits the VMEM budget (all buffers double-counted)."""
    itemsize = 4  # f32
    theta_bytes = 2 * x_ncol * n_class * itemsize        # theta IS double-buffered
    row_budget = max(budget - theta_bytes, 1 << 20)
    per_row = 2 * (x_ncol + n_class) * itemsize           # x tile + out tile, x2 buffers
    tm = row_budget // per_row
    tm = max(8, min(int(tm), 2048))
    tm = _round_down(tm, 8)                               # sublane alignment

    # Guarantee >= ~4 grid steps on mid/large batches so ("parallel",) can shard
    # rows across v7x's two TensorCores (and the pipeline has work to overlap).
    if n_rows > 256:
        tm = min(tm, max(8, _round_up(pl.cdiv(n_rows, 4), 8)))

    if n_rows <= tm:
        return n_rows                                     # full-extent block is legal
    return tm


def logit_prob(x_input: jax.Array, theta: jax.Array) -> jax.Array:
    """Pallas equivalent of LogitProb.forward.

    x_input : [N, x_ncol] float32
    theta   : [x_ncol, n_class - 1] float32
    returns : [N, n_class] float32, last column is exactly 0 (base category)
    """
    n_rows, x_ncol = x_input.shape
    assert theta.shape[0] == x_ncol
    n_class = theta.shape[1] + 1

    # Append exactly one zero column (the base category).  Tiny; hoist out of
    # the call path if theta is a long-lived parameter.
    theta_padded = jnp.pad(theta, ((0, 0), (0, 1)))

    vmem_limit, budget = _vmem_limits()
    tm = _choose_tm(n_rows, x_ncol, n_class, budget)
    grid = (pl.cdiv(n_rows, tm),)

    cost = pl.CostEstimate(
        flops=2 * n_rows * x_ncol * n_class,
        bytes_accessed=4 * (n_rows * x_ncol + x_ncol * n_class + n_rows * n_class),
        transcendentals=0,
    )

    return pl.pallas_call(
        functools.partial(_logit_prob_kernel, n_keep=n_class - 1),
        out_shape=jax.ShapeDtypeStruct((n_rows, n_class), x_input.dtype),
        grid=grid,
        in_specs=[
            pl.BlockSpec((tm, x_ncol), lambda i: (i, 0)),        # row-tiled, pipelined
            pl.BlockSpec((x_ncol, n_class), lambda i: (0, 0)),   # resident theta
        ],
        out_specs=pl.BlockSpec((tm, n_class), lambda i: (i, 0)),  # direct-width output
        compiler_params=pltpu.CompilerParams(
            dimension_semantics=("parallel",),
            vmem_limit_bytes=vmem_limit,
        ),
        cost_estimate=cost,
    )(x_input, theta_padded)


if __name__ == "__main__":
    # Small shapes consistent with the module: x is [N, x_ncol].
    N = 8        # x_nrow
    X_NCOL = 32  # number of columns of x
    N_CLASS = 8  # number of classes -> theta is [32, 7], out is [8, 8]

    key = jax.random.PRNGKey(0)
    k_x, k_theta = jax.random.split(key)

    x_input = jax.random.normal(k_x, (N, X_NCOL), dtype=jnp.float32)
    # Deterministic parameter init matching torch.randn(x_ncol, n_class-1)/sqrt(784)
    theta = jax.random.normal(
        k_theta, (X_NCOL, N_CLASS - 1), dtype=jnp.float32
    ) / math.sqrt(784)

    out = jax.jit(logit_prob)(x_input, theta)
    out = jax.block_until_ready(out)

    # Reference check in plain JAX.
    ref = jnp.pad(x_input @ theta, ((0, 0), (0, 1)))
    assert out.shape == (N, N_CLASS), out.shape
    assert jnp.allclose(out, ref, atol=1e-5, rtol=1e-5)
    assert jnp.all(out[:, -1] == 0.0)

    print("KERNEL_OK")
</pallas_src>

<mosaic_0001>
module attributes {stable_mosaic.version = 11 : i64} {
  func.func @_logit_prob_kernel(%arg0: i32, %arg1: memref<8x32xf32, #tpu.memory_space<vmem>>, %arg2: memref<32x8xf32, #tpu.memory_space<vmem>>, %arg3: memref<8x8xf32, #tpu.memory_space<vmem>>) attributes {dimension_semantics = [#tpu.dimension_semantics<parallel>], iteration_bounds = array<i64: 1>, scalar_prefetch = 0 : i64, scratch_operands = 0 : i64, tpu.core_type = #tpu.core_type<tc>, window_params = [{transform_indices = @transform_0, window_bounds = array<i64: 8, 32>}, {pipeline_mode = #tpu.pipeline_mode<synchronous>, transform_indices = @transform_1, window_bounds = array<i64: 32, 8>}, {transform_indices = @transform_2, window_bounds = array<i64: 8, 8>}]} {
    %c0 = arith.constant 0 : index
    %c0_0 = arith.constant 0 : index
    %0 = vector.load %arg1[%c0, %c0_0] : memref<8x32xf32, #tpu.memory_space<vmem>>, vector<8x32xf32>
    %c0_1 = arith.constant 0 : index
    %c0_2 = arith.constant 0 : index
    %1 = vector.load %arg2[%c0_1, %c0_2] : memref<32x8xf32, #tpu.memory_space<vmem>>, vector<32x8xf32>
    %cst = arith.constant dense<0.000000e+00> : vector<8x8xf32>
    %2 = tpu.matmul %0, %1, %cst {dimension_numbers = #tpu.dot_dimension_numbers<[1], [0], [0], [1], [0, 0, 1, 1], [], []>, precision = #tpu.contract_precision<fp32>} : vector<8x32xf32>, vector<32x8xf32>, vector<8x8xf32> -> vector<8x8xf32>
    %3 = tpu.iota {dimensions = array<i32: 1>} : vector<8x8xi32>
    %c7_i32 = arith.constant 7 : i32
    %4 = vector.broadcast %c7_i32 : i32 to vector<8x8xi32>
    %5 = arith.cmpi slt, %3, %4 : vector<8x8xi32>
    %cst_3 = arith.constant 0.000000e+00 : f32
    %6 = vector.broadcast %cst_3 : f32 to vector<8x8xf32>
    %7 = arith.select %5, %2, %6 : vector<8x8xi1>, vector<8x8xf32>
    %c0_4 = arith.constant 0 : index
    %c0_5 = arith.constant 0 : index
    %8 = vector.load %arg3[%c0_4, %c0_5] : memref<8x8xf32, #tpu.memory_space<vmem>>, vector<8x8xf32>
    tpu.vector_store %arg3[%c0_4, %c0_5], %7 {strides = array<i32>} : memref<8x8xf32, #tpu.memory_space<vmem>>, vector<8x8xf32>,
    return
  }
  func.func @transform_0(%arg0: i32) -> (i32, i32) {
    %c0_i32 = arith.constant 0 : i32
    %c0_i32_0 = arith.constant 0 : i32
    return %arg0, %c0_i32 : i32, i32
  }
  func.func @transform_1(%arg0: i32) -> (i32, i32) {
    %c0_i32 = arith.constant 0 : i32
    %c0_i32_0 = arith.constant 0 : i32
    %c0_i32_1 = arith.constant 0 : i32
    return %c0_i32, %c0_i32_0 : i32, i32
  }
  func.func @transform_2(%arg0: i32) -> (i32, i32) {
    %c0_i32 = arith.constant 0 : i32
    %c0_i32_0 = arith.constant 0 : i32
    return %arg0, %c0_i32 : i32, i32
  }
}

</mosaic_0001>

<llo_original>
// kernel: logit_prob.1
$region0: #{logit_prob.1}
  #allocation0 [shape = 'u32[]', space=smem, size = 0x4, offset = 0x4, fixed_abs, tag = 'smem constant byte address 0x4 - core index']
  #allocation1 [shape = 'u32[72,128]{1,0:T(1,128)}', space=vmem, size = 0x9000, scoped, tag = 'internal scratch']
  %s0 = inlined_call_operand.vmem [shape: f32[8,32], index: 0, kind: input, shape index: {}]
  %s1 = inlined_call_operand.vmem [shape: f32[32,8], index: 1, kind: input, shape index: {}]
  %s2 = inlined_call_operand.hbm [shape: f32[8,8], index: 2, kind: output, shape index: {}]
  %s3 = sld [smem:[#allocation0]]
  $region18: #{logit_prob.1} parent=0
    _
  %s5 = ssub.s32 1, %s3
  %s6 = scalar_select 0, %s5, %s3
  $region1: #{logit_prob.1} parent=0
    #allocation2 [shape = 'u8[4096]{0}', space=vmem, size = 0x1000, scoped, tag = 'output window, operand 0, single buffered']
    #allocation3 [shape = 's32[1]{0}', space=sflag, size = 0x4, scoped, tag = 'scoped memory for logit_prob.1']
    %7 = vsyncpa [#allocation3], 0
    // Predicated region
    $region2: #{logit_prob.1} parent=1 // pred_check
      _
    $region3: #{logit_prob.1} parent=1 // pred_check_branch
      %9 = sbr.rel (0) target = $region5
    $region4: #{logit_prob.1} parent=1 // pred_region
      _
    $region5: #{logit_prob.1} parent=1 // pred_fallthru
      _
    // Predicated region
    $region6: #{logit_prob.1} parent=1 // pred_check
      _
    $region7: #{logit_prob.1} parent=1 // pred_check_branch
      %11 = sbr.rel (0) target = $region9
    $region8: #{logit_prob.1} parent=1 // pred_region
      _
    $region9: #{logit_prob.1} parent=1 // pred_fallthru
      _
    %v12 = vld [vmem:[%s0] sm:$0xff]
    %v13 = vld [vmem:[%s1] sm:$0xff]
    %v14 = vld [vmem:[%s1 + $0x8] sm:$0xff]
    %v15 = vld [vmem:[%s1 + $0x10] sm:$0xff]
    %v16 = vld [vmem:[%s1 + $0x18] sm:$0xff]
    %vm17 = vcmask 261120
    %v19 = vsel %vm17, %v12, 0
    %21 = vmatpush.msra.mxu0 0.0
    %22 = vmatpush.msra.mxu0 0.0
    %23 = vmatpush.msra.mxu0 0.0
    %24 = vmatpush.msra.mxu0 0.0
    %25 = vmatpush.msra.mxu0 0.0
    %26 = vmatpush.msra.mxu0 0.0
    %27 = vmatpush.msra.mxu0 0.0
    %28 = vmatpush.msra.mxu0 0.0
    %29 = vmatpush.msra.mxu0 0.0
    %30 = vmatpush.msra.mxu0 0.0
    %31 = vmatpush.msra.mxu0 0.0
    %32 = vmatpush.msra.mxu0 0.0
    %v33 = vand.u32 %v16, 4294901760
    %34 = vmatpush.msra.mxu0 %v33
    %v35 = vand.u32 %v15, 4294901760
    %36 = vmatpush.msra.mxu0 %v35
    %v37 = vand.u32 %v14, 4294901760
    %38 = vmatpush.msra.mxu0 %v37
    %v39 = vand.u32 %v13, 4294901760
    %40 = vmatpush.msra.mxu0 %v39
    %v41 = vand.u32 %v19, 4294901760
    %v42 = vsub.f32 %v19, %v41
    %v43 = vand.u32 %v42, 4294901760
    %v44 = vsub.f32 %v42, %v43
    %v45 = vand.u32 %v44, 4294901760
    %46 = vmatmul.f32.gmra.mxu0 %v45
    %v47 = vpop.f32.mrf.mxu0
    %v48 = vadd.f32 0.0, %v47
    %49 = vdwg.mxu0
    %50 = vmatpush.msra.mxu0 0.0
    %51 = vmatpush.msra.mxu0 0.0
    %52 = vmatpush.msra.mxu0 0.0
    %53 = vmatpush.msra.mxu0 0.0
    %54 = vmatpush.msra.mxu0 0.0
    %55 = vmatpush.msra.mxu0 0.0
    %56 = vmatpush.msra.mxu0 0.0
    %57 = vmatpush.msra.mxu0 0.0
    %58 = vmatpush.msra.mxu0 0.0
    %59 = vmatpush.msra.mxu0 0.0
    %60 = vmatpush.msra.mxu0 0.0
    %61 = vmatpush.msra.mxu0 0.0
    %v62 = vand.u32 %v16, 4294901760
    %v63 = vsub.f32 %v16, %v62
    %v64 = vand.u32 %v63, 4294901760
    %v65 = vsub.f32 %v63, %v64
    %v66 = vand.u32 %v65, 4294901760
    %67 = vmatpush.msra.mxu0 %v66
    %v68 = vand.u32 %v15, 4294901760
    %v69 = vsub.f32 %v15, %v68
    %v70 = vand.u32 %v69, 4294901760
    %v71 = vsub.f32 %v69, %v70
    %v72 = vand.u32 %v71, 4294901760
    %73 = vmatpush.msra.mxu0 %v72
    %v74 = vand.u32 %v14, 4294901760
    %v75 = vsub.f32 %v14, %v74
    %v76 = vand.u32 %v75, 4294901760
    %v77 = vsub.f32 %v75, %v76
    %v78 = vand.u32 %v77, 4294901760
    %79 = vmatpush.msra.mxu0 %v78
    %v80 = vand.u32 %v13, 4294901760
    %v81 = vsub.f32 %v13, %v80
    %v82 = vand.u32 %v81, 4294901760
    %v83 = vsub.f32 %v81, %v82
    %v84 = vand.u32 %v83, 4294901760
    %85 = vmatpush.msra.mxu0 %v84
    %v86 = vand.u32 %v19, 4294901760
    %87 = vmatmul.f32.gmra.mxu0 %v86
    %v88 = vpop.f32.mrf.mxu0
    %v89 = vadd.f32 %v48, %v88
    %90 = vdwg.mxu0
    %91 = vmatpush.msra.mxu0 0.0
    %92 = vmatpush.msra.mxu0 0.0
    %93 = vmatpush.msra.mxu0 0.0
    %94 = vmatpush.msra.mxu0 0.0
    %95 = vmatpush.msra.mxu0 0.0
    %96 = vmatpush.msra.mxu0 0.0
    %97 = vmatpush.msra.mxu0 0.0
    %98 = vmatpush.msra.mxu0 0.0
    %99 = vmatpush.msra.mxu0 0.0
    %100 = vmatpush.msra.mxu0 0.0
    %101 = vmatpush.msra.mxu0 0.0
    %102 = vmatpush.msra.mxu0 0.0
    %v103 = vand.u32 %v16, 4294901760
    %v104 = vsub.f32 %v16, %v103
    %105 = vmatpush.msra.mxu0 %v104
    %v106 = vand.u32 %v15, 4294901760
    %v107 = vsub.f32 %v15, %v106
    %108 = vmatpush.msra.mxu0 %v107
    %v109 = vand.u32 %v14, 4294901760
    %v110 = vsub.f32 %v14, %v109
    %111 = vmatpush.msra.mxu0 %v110
    %v112 = vand.u32 %v13, 4294901760
    %v113 = vsub.f32 %v13, %v112
    %114 = vmatpush.msra.mxu0 %v113
    %v115 = vand.u32 %v19, 4294901760
    %v116 = vsub.f32 %v19, %v115
    %117 = vmatmul.f32.gmra.mxu0 %v116
    %v118 = vpop.f32.mrf.mxu0
    %v119 = vadd.f32 %v89, %v118
    %120 = vdwg.mxu0
    %121 = vmatpush.msra.mxu0 0.0
    %122 = vmatpush.msra.mxu0 0.0
    %123 = vmatpush.msra.mxu0 0.0
    %124 = vmatpush.msra.mxu0 0.0
    %125 = vmatpush.msra.mxu0 0.0
    %126 = vmatpush.msra.mxu0 0.0
    %127 = vmatpush.msra.mxu0 0.0
    %128 = vmatpush.msra.mxu0 0.0
    %129 = vmatpush.msra.mxu0 0.0
    %130 = vmatpush.msra.mxu0 0.0
    %131 = vmatpush.msra.mxu0 0.0
    %132 = vmatpush.msra.mxu0 0.0
    %v133 = vand.u32 %v16, 4294901760
    %134 = vmatpush.msra.mxu0 %v133
    %v135 = vand.u32 %v15, 4294901760
    %136 = vmatpush.msra.mxu0 %v135
    %v137 = vand.u32 %v14, 4294901760
    %138 = vmatpush.msra.mxu0 %v137
    %v139 = vand.u32 %v13, 4294901760
    %140 = vmatpush.msra.mxu0 %v139
    %v141 = vand.u32 %v19, 4294901760
    %v142 = vsub.f32 %v19, %v141
    %v143 = vand.u32 %v142, 4294901760
    %144 = vmatmul.f32.gmra.mxu0 %v143
    %v145 = vpop.f32.mrf.mxu0
    %v146 = vadd.f32 %v119, %v145
    %147 = vdwg.mxu0
    %148 = vmatpush.msra.mxu0 0.0
    %149 = vmatpush.msra.mxu0 0.0
    %150 = vmatpush.msra.mxu0 0.0
    %151 = vmatpush.msra.mxu0 0.0
    %152 = vmatpush.msra.mxu0 0.0
    %153 = vmatpush.msra.mxu0 0.0
    %154 = vmatpush.msra.mxu0 0.0
    %155 = vmatpush.msra.mxu0 0.0
    %156 = vmatpush.msra.mxu0 0.0
    %157 = vmatpush.msra.mxu0 0.0
    %158 = vmatpush.msra.mxu0 0.0
    %159 = vmatpush.msra.mxu0 0.0
    %v160 = vand.u32 %v16, 4294901760
    %v161 = vsub.f32 %v16, %v160
    %v162 = vand.u32 %v161, 4294901760
    %163 = vmatpush.msra.mxu0 %v162
    %v164 = vand.u32 %v15, 4294901760
    %v165 = vsub.f32 %v15, %v164
    %v166 = vand.u32 %v165, 4294901760
    %167 = vmatpush.msra.mxu0 %v166
    %v168 = vand.u32 %v14, 4294901760
    %v169 = vsub.f32 %v14, %v168
    %v170 = vand.u32 %v169, 4294901760
    %171 = vmatpush.msra.mxu0 %v170
    %v172 = vand.u32 %v13, 4294901760
    %v173 = vsub.f32 %v13, %v172
    %v174 = vand.u32 %v173, 4294901760
    %175 = vmatpush.msra.mxu0 %v174
    %v176 = vand.u32 %v19, 4294901760
    %177 = vmatmul.f32.gmra.mxu0 %v176
    %v178 = vpop.f32.mrf.mxu0
    %v179 = vadd.f32 %v146, %v178
    %180 = vdwg.mxu0
    %181 = vmatpush.msra.mxu0 0.0
    %182 = vmatpush.msra.mxu0 0.0
    %183 = vmatpush.msra.mxu0 0.0
    %184 = vmatpush.msra.mxu0 0.0
    %185 = vmatpush.msra.mxu0 0.0
    %186 = vmatpush.msra.mxu0 0.0
    %187 = vmatpush.msra.mxu0 0.0
    %188 = vmatpush.msra.mxu0 0.0
    %189 = vmatpush.msra.mxu0 0.0
    %190 = vmatpush.msra.mxu0 0.0
    %191 = vmatpush.msra.mxu0 0.0
    %192 = vmatpush.msra.mxu0 0.0
    %v193 = vand.u32 %v16, 4294901760
    %194 = vmatpush.msra.mxu0 %v193
    %v195 = vand.u32 %v15, 4294901760
    %196 = vmatpush.msra.mxu0 %v195
    %v197 = vand.u32 %v14, 4294901760
    %198 = vmatpush.msra.mxu0 %v197
    %v199 = vand.u32 %v13, 4294901760
    %200 = vmatpush.msra.mxu0 %v199
    %v201 = vand.u32 %v19, 4294901760
    %202 = vmatmul.f32.gmra.mxu0 %v201
    %v203 = vpop.f32.mrf.mxu0
    %v204 = vadd.f32 %v179, %v203
    %205 = vdwg.mxu0
    %v206 = vlaneseq
    %v207 = vand.u32 %v206, 127
    %vm208 = vcmp.lt.s32.totalorder %v207, 7
    %v209 = vsel %vm208, %v204, 0.0
    %vm210 = vcmask 64512
    %211 = vst.msk [vmem:[#allocation2] sm:$0xff] %vm210, %v209
    // Predicated region
    $region10: #{logit_prob.1} parent=1 // pred_check
      _
    $region11: #{logit_prob.1} parent=1 // pred_check_branch
      %213 = sbr.rel (0) target = $region13
    $region12: #{logit_prob.1} parent=1 // pred_region
      %215 = vsyncadd [#allocation3], 0
      %s217 = sshll.u32 [#allocation2], 4
      %s218 = int_to_ptr.vmem [resolvable:$true] %s217
      %s219 = sshll.u32 %s2, 4
      %s220 = int_to_ptr.hbm [resolvable:$true] %s219
      %222 = dma.vmem_to_hbm [thread:$0]  %s218, 128, %s220, [#allocation3]
    $region13: #{logit_prob.1} parent=1 // pred_fallthru
      _
    // Predicated region
    $region14: #{logit_prob.1} parent=1 // pred_check
      _
    $region15: #{logit_prob.1} parent=1 // pred_check_branch
      %224 = sbr.rel (0) target = $region17
    $region16: #{logit_prob.1} parent=1 // pred_region
      %226 = dma.done [#allocation3], 128
    $region17: #{logit_prob.1} parent=1 // pred_fallthru
      _
    %227 = vsyncpa [#allocation3], 1

</llo_original>
